<compile_context>
chip_gen: v7x
topology: tpu7x:2x2x1
jax: 0.10.0
libtpu: 0.0.40
codegen_flags: <defaults>
</compile_context>

<pallas_src>
import jax
import jax.numpy as jnp
from jax.experimental import pallas as pl
from jax.experimental.pallas import tpu as pltpu

_LANE = 128
_MAX_TS = 65536                       # lane-dim cap on a spatial tile


def _round_up(v, m):
    return -(-v // m) * m


def _tpu_vmem_bytes():
    """Physical VMEM capacity (128 MiB v5e/v6e, 64 MiB v7x); safe fallback."""
    try:
        return int(pltpu.get_tpu_info().vmem_capacity_bytes)
    except Exception:
        return 64 * 1024 * 1024       # conservative (v7x-sized)


def _pick_spatial_tile(s_sp, bytes_per_col, budget, n_batch, ts_cap=None):
    """Largest lane-dense spatial tile whose double-buffered blocks fit budget."""
    max_ts = max(_LANE, (budget // max(bytes_per_col, 1)) // _LANE * _LANE)
    max_ts = min(max_ts, _MAX_TS)
    if ts_cap is not None:
        max_ts = max(_LANE, min(max_ts, ts_cap))
    ts = s_sp if s_sp <= max_ts else max_ts     # full dim is always legal
    # Megacore: guarantee >= 2 grid steps when N == 1 (v7x has 2 TCs/chip).
    if n_batch == 1 and ts >= s_sp and s_sp > _LANE:
        ts = max(_LANE, _round_up(-(-s_sp // 2), _LANE))
    return ts


# --------------------------- streaming path kernels ---------------------------

def _make_stats_kernel(ts, s_sp):
    has_tail = (s_sp % ts) != 0

    def kernel(x_ref, out_ref):
        x = x_ref[...].astype(jnp.float32)                       # (C, TS)
        if has_tail:
            rem = s_sp - pl.program_id(1) * ts                   # scalar
            col = jax.lax.broadcasted_iota(jnp.int32, (1, ts), 1)
            valid = col < rem                                    # (1, TS) bcast
            x = jnp.where(valid, x, 0.0)
            nv = jnp.minimum(ts, rem).astype(jnp.float32)
        else:
            nv = jnp.float32(ts)
        blk_sum = jnp.sum(x, axis=1, keepdims=True)              # (C, 1)
        blk_mean = blk_sum / nv
        d = x - blk_mean
        if has_tail:
            d = jnp.where(valid, d, 0.0)
        blk_m2 = jnp.sum(d * d, axis=1, keepdims=True)           # (C, 1)
        out_ref[:, 0:1] = blk_sum
        out_ref[:, 1:2] = blk_m2

    return kernel


def _make_fused_kernel(use_bf16_mxu):
    def kernel(x_ref, scale_ref, shift_ref, w_ref, b_ref, o_ref):
        x = x_ref[...].astype(jnp.float32)                       # (C, TS)
        y = x * scale_ref[...] + shift_ref[...]                  # folded BN
        y = jnp.where(y >= 0, y, jnp.float32(0.01) * y)          # LeakyReLU
        w = w_ref[...]
        if use_bf16_mxu:
            y = y.astype(jnp.bfloat16)
            w = w.astype(jnp.bfloat16)
        else:
            w = w.astype(jnp.float32)
        out = jnp.dot(w, y, preferred_element_type=jnp.float32)  # (O, TS)
        out = out + b_ref[...]
        o_ref[...] = out.astype(o_ref.dtype)

    return kernel


# --------------------------- VMEM-resident fast path ---------------------------

def _make_fastpath_kernel(n_batch, n_ch, s_sp, eps, use_bf16_mxu):
    inv_cnt = 1.0 / float(n_batch * s_sp)

    def kernel(x_ref, gamma_ref, beta_ref, w_ref, b_ref, o_ref):
        # per-channel sum over (N, S)
        total = jnp.zeros((n_ch, 1), jnp.float32)
        for n in range(n_batch):
            xn = x_ref[n].astype(jnp.float32)                    # (C, S)
            total = total + jnp.sum(xn, axis=1, keepdims=True)
        mean = total * inv_cnt                                   # (C, 1)
        # per-channel biased M2 / variance
        m2 = jnp.zeros((n_ch, 1), jnp.float32)
        for n in range(n_batch):
            d = x_ref[n].astype(jnp.float32) - mean
            m2 = m2 + jnp.sum(d * d, axis=1, keepdims=True)
        var = m2 * inv_cnt
        scale = gamma_ref[...] * jax.lax.rsqrt(var + eps)        # (C, 1)
        shift = beta_ref[...] - mean * scale
        w = w_ref[...]
        w = w.astype(jnp.bfloat16) if use_bf16_mxu else w.astype(jnp.float32)
        for n in range(n_batch):
            y = x_ref[n].astype(jnp.float32) * scale + shift
            y = jnp.where(y >= 0, y, jnp.float32(0.01) * y)
            if use_bf16_mxu:
                y = y.astype(jnp.bfloat16)
            out = jnp.dot(w, y, preferred_element_type=jnp.float32)
            o_ref[n] = (out + b_ref[...]).astype(o_ref.dtype)

    return kernel


# --------------------------------- wrapper ---------------------------------

def conv_snp_forward(x, gamma, beta, w, b, eps=1e-5,
                     allow_fast_path=True, ts_cap=None):
    """x: (N, C, D, H, W); w: (O, C, 1, 1, 1); b: (O,). Returns (N, O, D, H, W)."""
    N, C, D, H, W = x.shape
    O = w.shape[0]
    S = D * H * W

    x3 = x.reshape(N, C, S)                      # zero-copy view, no transpose
    x_bytes = jnp.dtype(x.dtype).itemsize
    o_bytes = x_bytes                            # output keeps input dtype

    vmem_cap = _tpu_vmem_bytes()
    vmem_limit = min(vmem_cap * 3 // 4, 96 * 1024 * 1024)        # 48 MiB on v7x
    step_budget = min(max(vmem_cap // 8, 4 * 1024 * 1024), 16 * 1024 * 1024)

    use_bf16_mxu = C >= 64                       # f32 matmul is multi-pass on MXU

    w2 = w.reshape(O, C).astype(jnp.float32)
    b2 = b.reshape(O, 1).astype(jnp.float32)
    gamma2 = gamma.reshape(C, 1).astype(jnp.float32)
    beta2 = beta.reshape(C, 1).astype(jnp.float32)

    # ---- single-kernel fast path: whole activation resident in VMEM ----
    resident_bytes = N * S * (C * x_bytes + O * o_bytes)
    if allow_fast_path and N <= 32 and resident_bytes <= vmem_cap // 4:
        out3 = pl.pallas_call(
            _make_fastpath_kernel(N, C, S, eps, use_bf16_mxu),
            out_shape=jax.ShapeDtypeStruct((N, O, S), x.dtype),
            grid_spec=pltpu.PrefetchScalarGridSpec(
                num_scalar_prefetch=0, grid=(1,),
                in_specs=[
                    pl.BlockSpec((N, C, S), lambda i: (0, 0, 0)),
                    pl.BlockSpec((C, 1), lambda i: (0, 0)),
                    pl.BlockSpec((C, 1), lambda i: (0, 0)),
                    pl.BlockSpec((O, C), lambda i: (0, 0)),
                    pl.BlockSpec((O, 1), lambda i: (0, 0)),
                ],
                out_specs=pl.BlockSpec((N, O, S), lambda i: (0, 0, 0))),
            compiler_params=pltpu.CompilerParams(
                dimension_semantics=("arbitrary",),
                vmem_limit_bytes=vmem_limit),
        )(x3, gamma2, beta2, w2, b2)
        return out3.reshape(N, O, D, H, W)

    # ---- streaming two-pass path ----
    cparams = pltpu.CompilerParams(
        dimension_semantics=("parallel", "parallel"),
        vmem_limit_bytes=vmem_limit)

    # pass 1: per-block (sum, M2) partials.  No (O, TS) output block here, so
    # the stats pass gets its own, larger spatial tile.
    TS1 = _pick_spatial_tile(S, 2 * x_bytes * C, step_budget, N, ts_cap)
    GS1 = pl.cdiv(S, TS1)
    partials = pl.pallas_call(
        _make_stats_kernel(TS1, S),
        out_shape=jax.ShapeDtypeStruct((N, GS1, C, 2), jnp.float32),
        grid_spec=pltpu.PrefetchScalarGridSpec(
            num_scalar_prefetch=0, grid=(N, GS1),
            in_specs=[pl.BlockSpec((None, C, TS1), lambda n, s: (n, 0, s))],
            out_specs=pl.BlockSpec((None, None, C, 2),
                                   lambda n, s: (n, s, 0, 0))),
        compiler_params=cparams,
    )(x3)

    blk_sum = partials[..., 0]                                   # (N, GS1, C)
    blk_m2 = partials[..., 1]                                    # (N, GS1, C)
    counts = jnp.minimum(TS1, S - jnp.arange(GS1) * TS1).astype(jnp.float32)
    total = float(N * S)
    mean = blk_sum.sum(axis=(0, 1)) / total                      # (C,)
    blk_mean = blk_sum / counts[None, :, None]
    m2 = blk_m2.sum(axis=(0, 1)) + (
        counts[None, :, None] * (blk_mean - mean[None, None, :]) ** 2
    ).sum(axis=(0, 1))
    var = m2 / total                                             # biased (BN)

    scale = gamma.astype(jnp.float32) * jax.lax.rsqrt(var + eps)
    shift = beta.astype(jnp.float32) - mean * scale
    scale2 = scale.reshape(C, 1)
    shift2 = shift.reshape(C, 1)

    # pass 2: fused BN + LeakyReLU + 1x1x1 conv (matmul) + bias
    TS2 = _pick_spatial_tile(S, 2 * (x_bytes * C + o_bytes * O),
                             step_budget, N, ts_cap)
    GS2 = pl.cdiv(S, TS2)
    out3 = pl.pallas_call(
        _make_fused_kernel(use_bf16_mxu),
        out_shape=jax.ShapeDtypeStruct((N, O, S), x.dtype),
        grid_spec=pltpu.PrefetchScalarGridSpec(
            num_scalar_prefetch=0, grid=(N, GS2),
            in_specs=[
                pl.BlockSpec((None, C, TS2), lambda n, s: (n, 0, s)),
                pl.BlockSpec((C, 1), lambda n, s: (0, 0)),
                pl.BlockSpec((C, 1), lambda n, s: (0, 0)),
                pl.BlockSpec((O, C), lambda n, s: (0, 0)),
                pl.BlockSpec((O, 1), lambda n, s: (0, 0)),
            ],
            out_specs=pl.BlockSpec((None, O, TS2), lambda n, s: (n, 0, s))),
        compiler_params=cparams,
    )(x3, scale2, shift2, w2, b2)

    return out3.reshape(N, O, D, H, W)


# ---------- pure-JAX reference (for correctness check only) ----------

def _ref_forward(x, gamma, beta, w, b, eps=1e-5):
    mean = x.mean(axis=(0, 2, 3, 4), keepdims=True)
    var = x.var(axis=(0, 2, 3, 4), keepdims=True)       # biased (ddof=0)
    g = gamma[None, :, None, None, None]
    bt = beta[None, :, None, None, None]
    y = (x - mean) * jax.lax.rsqrt(var + eps) * g + bt
    y = jnp.where(y >= 0, y, 0.01 * y)
    w2 = w.reshape(w.shape[0], w.shape[1])
    out = jnp.einsum('ncdhw,oc->nodhw', y, w2)
    return out + b[None, :, None, None, None]


if __name__ == "__main__":
    in_ch, out_ch = 4, 8
    N, D, H, W = 2, 4, 8, 16                            # S = D*H*W = 512

    key = jax.random.PRNGKey(0)
    kx, kg, kb, kw, kbs = jax.random.split(key, 5)

    x = jax.random.normal(kx, (N, in_ch, D, H, W), dtype=jnp.float32)
    gamma = 1.0 + 0.1 * jax.random.normal(kg, (in_ch,), dtype=jnp.float32)
    beta = 0.1 * jax.random.normal(kb, (in_ch,), dtype=jnp.float32)
    w = 0.5 * jax.random.normal(kw, (out_ch, in_ch, 1, 1, 1), dtype=jnp.float32)
    b = 0.1 * jax.random.normal(kbs, (out_ch,), dtype=jnp.float32)

    ref = _ref_forward(x, gamma, beta, w, b)

    # 1) VMEM-resident single-kernel fast path (default dispatch for this size)
    out_fast = jax.block_until_ready(conv_snp_forward(x, gamma, beta, w, b))
    assert out_fast.shape == (N, out_ch, D, H, W)
    assert jnp.allclose(out_fast, ref, rtol=1e-4, atol=1e-4), "fast path mismatch"

    # 2) streaming two-pass path (forced) on the same inputs
    out_stream = jax.block_until_ready(
        conv_snp_forward(x, gamma, beta, w, b, allow_fast_path=False))
    assert jnp.allclose(out_stream, ref, rtol=1e-4, atol=1e-4), "stream mismatch"

    # 3) streaming path with a masked tail block and the N==1 megacore split
    x1 = jax.random.normal(kx, (1, in_ch, 3, 5, 20), dtype=jnp.float32)  # S=300
    ref1 = _ref_forward(x1, gamma, beta, w, b)
    out1 = jax.block_until_ready(
        conv_snp_forward(x1, gamma, beta, w, b, allow_fast_path=False, ts_cap=512))
    assert jnp.allclose(out1, ref1, rtol=1e-4, atol=1e-4), "tail-block mismatch"

    print("KERNEL_OK")
</pallas_src>

<mosaic_0001>
module attributes {stable_mosaic.version = 11 : i64} {
  func.func @kernel(%arg0: i32, %arg1: memref<2x4x512xf32, #tpu.memory_space<vmem>>, %arg2: memref<4x1xf32, #tpu.memory_space<vmem>>, %arg3: memref<4x1xf32, #tpu.memory_space<vmem>>, %arg4: memref<8x4xf32, #tpu.memory_space<vmem>>, %arg5: memref<8x1xf32, #tpu.memory_space<vmem>>, %arg6: memref<2x8x512xf32, #tpu.memory_space<vmem>>) attributes {dimension_semantics = [#tpu.dimension_semantics<arbitrary>], iteration_bounds = array<i64: 1>, scalar_prefetch = 0 : i64, scratch_operands = 0 : i64, tpu.core_type = #tpu.core_type<tc>, window_params = [{pipeline_mode = #tpu.pipeline_mode<synchronous>, transform_indices = @transform_0, window_bounds = array<i64: 2, 4, 512>}, {pipeline_mode = #tpu.pipeline_mode<synchronous>, transform_indices = @transform_1, window_bounds = array<i64: 4, 1>}, {pipeline_mode = #tpu.pipeline_mode<synchronous>, transform_indices = @transform_2, window_bounds = array<i64: 4, 1>}, {pipeline_mode = #tpu.pipeline_mode<synchronous>, transform_indices = @transform_3, window_bounds = array<i64: 8, 4>}, {pipeline_mode = #tpu.pipeline_mode<synchronous>, transform_indices = @transform_4, window_bounds = array<i64: 8, 1>}, {pipeline_mode = #tpu.pipeline_mode<synchronous>, transform_indices = @transform_5, window_bounds = array<i64: 2, 8, 512>}]} {
    %cst = arith.constant 0.000000e+00 : f32
    %0 = vector.broadcast %cst : f32 to vector<4x1xf32>
    %c0 = arith.constant 0 : index
    %c0_0 = arith.constant 0 : index
    %c0_1 = arith.constant 0 : index
    %1 = vector.load %arg1[%c0, %c0_0, %c0_1] : memref<2x4x512xf32, #tpu.memory_space<vmem>>, vector<1x4x512xf32>
    %2 = vector.shape_cast %1 : vector<1x4x512xf32> to vector<4x512xf32>
    %cst_2 = arith.constant dense<0.000000e+00> : vector<4xf32>
    %3 = vector.multi_reduction <add>, %2, %cst_2 [1] : vector<4x512xf32> to vector<4xf32>
    %4 = vector.shape_cast %3 : vector<4xf32> to vector<4x1xf32>
    %5 = arith.addf %0, %4 : vector<4x1xf32>
    %c1 = arith.constant 1 : index
    %c0_3 = arith.constant 0 : index
    %c0_4 = arith.constant 0 : index
    %6 = vector.load %arg1[%c1, %c0_3, %c0_4] : memref<2x4x512xf32, #tpu.memory_space<vmem>>, vector<1x4x512xf32>
    %7 = vector.shape_cast %6 : vector<1x4x512xf32> to vector<4x512xf32>
    %cst_5 = arith.constant dense<0.000000e+00> : vector<4xf32>
    %8 = vector.multi_reduction <add>, %7, %cst_5 [1] : vector<4x512xf32> to vector<4xf32>
    %9 = vector.shape_cast %8 : vector<4xf32> to vector<4x1xf32>
    %10 = arith.addf %5, %9 : vector<4x1xf32>
    %cst_6 = arith.constant 9.765625E-4 : f32
    %11 = vector.broadcast %cst_6 : f32 to vector<4x1xf32>
    %12 = arith.mulf %10, %11 : vector<4x1xf32>
    %cst_7 = arith.constant 0.000000e+00 : f32
    %13 = vector.broadcast %cst_7 : f32 to vector<4x1xf32>
    %c0_8 = arith.constant 0 : index
    %c0_9 = arith.constant 0 : index
    %c0_10 = arith.constant 0 : index
    %14 = vector.load %arg1[%c0_8, %c0_9, %c0_10] : memref<2x4x512xf32, #tpu.memory_space<vmem>>, vector<1x4x512xf32>
    %15 = vector.shape_cast %14 : vector<1x4x512xf32> to vector<4x512xf32>
    %16 = vector.broadcast %12 : vector<4x1xf32> to vector<4x512xf32>
    %17 = arith.subf %15, %16 : vector<4x512xf32>
    %18 = arith.mulf %17, %17 : vector<4x512xf32>
    %cst_11 = arith.constant dense<0.000000e+00> : vector<4xf32>
    %19 = vector.multi_reduction <add>, %18, %cst_11 [1] : vector<4x512xf32> to vector<4xf32>
    %20 = vector.shape_cast %19 : vector<4xf32> to vector<4x1xf32>
    %21 = arith.addf %13, %20 : vector<4x1xf32>
    %c1_12 = arith.constant 1 : index
    %c0_13 = arith.constant 0 : index
    %c0_14 = arith.constant 0 : index
    %22 = vector.load %arg1[%c1_12, %c0_13, %c0_14] : memref<2x4x512xf32, #tpu.memory_space<vmem>>, vector<1x4x512xf32>
    %23 = vector.shape_cast %22 : vector<1x4x512xf32> to vector<4x512xf32>
    %24 = vector.broadcast %12 : vector<4x1xf32> to vector<4x512xf32>
    %25 = arith.subf %23, %24 : vector<4x512xf32>
    %26 = arith.mulf %25, %25 : vector<4x512xf32>
    %cst_15 = arith.constant dense<0.000000e+00> : vector<4xf32>
    %27 = vector.multi_reduction <add>, %26, %cst_15 [1] : vector<4x512xf32> to vector<4xf32>
    %28 = vector.shape_cast %27 : vector<4xf32> to vector<4x1xf32>
    %29 = arith.addf %21, %28 : vector<4x1xf32>
    %cst_16 = arith.constant 9.765625E-4 : f32
    %30 = vector.broadcast %cst_16 : f32 to vector<4x1xf32>
    %31 = arith.mulf %29, %30 : vector<4x1xf32>
    %c0_17 = arith.constant 0 : index
    %c0_18 = arith.constant 0 : index
    %32 = vector.load %arg2[%c0_17, %c0_18] : memref<4x1xf32, #tpu.memory_space<vmem>>, vector<4x1xf32>
    %cst_19 = arith.constant 9.99999974E-6 : f32
    %33 = vector.broadcast %cst_19 : f32 to vector<4x1xf32>
    %34 = arith.addf %31, %33 : vector<4x1xf32>
    %35 = math.rsqrt %34 : vector<4x1xf32>
    %36 = arith.mulf %32, %35 : vector<4x1xf32>
    %c0_20 = arith.constant 0 : index
    %c0_21 = arith.constant 0 : index
    %37 = vector.load %arg3[%c0_20, %c0_21] : memref<4x1xf32, #tpu.memory_space<vmem>>, vector<4x1xf32>
    %38 = arith.mulf %12, %36 : vector<4x1xf32>
    %39 = arith.subf %37, %38 : vector<4x1xf32>
    %c0_22 = arith.constant 0 : index
    %c0_23 = arith.constant 0 : index
    %40 = vector.load %arg4[%c0_22, %c0_23] : memref<8x4xf32, #tpu.memory_space<vmem>>, vector<8x4xf32>
    %c0_24 = arith.constant 0 : index
    %c0_25 = arith.constant 0 : index
    %c0_26 = arith.constant 0 : index
    %41 = vector.load %arg1[%c0_24, %c0_25, %c0_26] : memref<2x4x512xf32, #tpu.memory_space<vmem>>, vector<1x4x512xf32>
    %42 = vector.shape_cast %41 : vector<1x4x512xf32> to vector<4x512xf32>
    %43 = vector.broadcast %36 : vector<4x1xf32> to vector<4x512xf32>
    %44 = arith.mulf %42, %43 : vector<4x512xf32>
    %45 = vector.broadcast %39 : vector<4x1xf32> to vector<4x512xf32>
    %46 = arith.addf %44, %45 : vector<4x512xf32>
    %cst_27 = arith.constant 0.000000e+00 : f32
    %47 = vector.broadcast %cst_27 : f32 to vector<4x512xf32>
    %48 = arith.cmpf oge, %46, %47 : vector<4x512xf32>
    %cst_28 = arith.constant 0.00999999977 : f32
    %49 = vector.broadcast %cst_28 : f32 to vector<4x512xf32>
    %50 = arith.mulf %49, %46 : vector<4x512xf32>
    %51 = arith.select %48, %46, %50 : vector<4x512xi1>, vector<4x512xf32>
    %cst_29 = arith.constant dense<0.000000e+00> : vector<8x512xf32>
    %52 = tpu.matmul %40, %51, %cst_29 {dimension_numbers = #tpu.dot_dimension_numbers<[1], [0], [0], [1], [0, 0, 1, 1], [], []>} : vector<8x4xf32>, vector<4x512xf32>, vector<8x512xf32> -> vector<8x512xf32>
    %c0_30 = arith.constant 0 : index
    %c0_31 = arith.constant 0 : index
    %53 = vector.load %arg5[%c0_30, %c0_31] : memref<8x1xf32, #tpu.memory_space<vmem>>, vector<8x1xf32>
    %54 = vector.broadcast %53 : vector<8x1xf32> to vector<8x512xf32>
    %55 = arith.addf %52, %54 : vector<8x512xf32>
    %c0_32 = arith.constant 0 : index
    %c0_33 = arith.constant 0 : index
    %c0_34 = arith.constant 0 : index
    %56 = vector.load %arg6[%c0_32, %c0_33, %c0_34] : memref<2x8x512xf32, #tpu.memory_space<vmem>>, vector<1x8x512xf32>
    %57 = vector.shape_cast %56 : vector<1x8x512xf32> to vector<8x512xf32>
    %58 = vector.shape_cast %55 : vector<8x512xf32> to vector<1x8x512xf32>
    tpu.vector_store %arg6[%c0_32, %c0_33, %c0_34], %58 {strides = array<i32>} : memref<2x8x512xf32, #tpu.memory_space<vmem>>, vector<1x8x512xf32>,
    %c1_35 = arith.constant 1 : index
    %c0_36 = arith.constant 0 : index
    %c0_37 = arith.constant 0 : index
    %59 = vector.load %arg1[%c1_35, %c0_36, %c0_37] : memref<2x4x512xf32, #tpu.memory_space<vmem>>, vector<1x4x512xf32>
    %60 = vector.shape_cast %59 : vector<1x4x512xf32> to vector<4x512xf32>
    %61 = vector.broadcast %36 : vector<4x1xf32> to vector<4x512xf32>
    %62 = arith.mulf %60, %61 : vector<4x512xf32>
    %63 = vector.broadcast %39 : vector<4x1xf32> to vector<4x512xf32>
    %64 = arith.addf %62, %63 : vector<4x512xf32>
    %cst_38 = arith.constant 0.000000e+00 : f32
    %65 = vector.broadcast %cst_38 : f32 to vector<4x512xf32>
    %66 = arith.cmpf oge, %64, %65 : vector<4x512xf32>
    %cst_39 = arith.constant 0.00999999977 : f32
    %67 = vector.broadcast %cst_39 : f32 to vector<4x512xf32>
    %68 = arith.mulf %67, %64 : vector<4x512xf32>
    %69 = arith.select %66, %64, %68 : vector<4x512xi1>, vector<4x512xf32>
    %cst_40 = arith.constant dense<0.000000e+00> : vector<8x512xf32>
    %70 = tpu.matmul %40, %69, %cst_40 {dimension_numbers = #tpu.dot_dimension_numbers<[1], [0], [0], [1], [0, 0, 1, 1], [], []>} : vector<8x4xf32>, vector<4x512xf32>, vector<8x512xf32> -> vector<8x512xf32>
    %c0_41 = arith.constant 0 : index
    %c0_42 = arith.constant 0 : index
    %71 = vector.load %arg5[%c0_41, %c0_42] : memref<8x1xf32, #tpu.memory_space<vmem>>, vector<8x1xf32>
    %72 = vector.broadcast %71 : vector<8x1xf32> to vector<8x512xf32>
    %73 = arith.addf %70, %72 : vector<8x512xf32>
    %c1_43 = arith.constant 1 : index
    %c0_44 = arith.constant 0 : index
    %c0_45 = arith.constant 0 : index
    %74 = vector.load %arg6[%c1_43, %c0_44, %c0_45] : memref<2x8x512xf32, #tpu.memory_space<vmem>>, vector<1x8x512xf32>
    %75 = vector.shape_cast %74 : vector<1x8x512xf32> to vector<8x512xf32>
    %76 = vector.shape_cast %73 : vector<8x512xf32> to vector<1x8x512xf32>
    tpu.vector_store %arg6[%c1_43, %c0_44, %c0_45], %76 {strides = array<i32>} : memref<2x8x512xf32, #tpu.memory_space<vmem>>, vector<1x8x512xf32>,
    return
  }
  func.func @transform_0(%arg0: i32) -> (i32, i32, i32) {
    %c0_i32 = arith.constant 0 : i32
    %c0_i32_0 = arith.constant 0 : i32
    %c0_i32_1 = arith.constant 0 : i32
    %c0_i32_2 = arith.constant 0 : i32
    return %c0_i32, %c0_i32_0, %c0_i32_1 : i32, i32, i32
  }
  func.func @transform_1(%arg0: i32) -> (i32, i32) {
    %c0_i32 = arith.constant 0 : i32
    %c0_i32_0 = arith.constant 0 : i32
    %c0_i32_1 = arith.constant 0 : i32
    return %c0_i32, %c0_i32_0 : i32, i32
  }
  func.func @transform_2(%arg0: i32) -> (i32, i32) {
    %c0_i32 = arith.constant 0 : i32
    %c0_i32_0 = arith.constant 0 : i32
    %c0_i32_1 = arith.constant 0 : i32
    return %c0_i32, %c0_i32_0 : i32, i32
  }
  func.func @transform_3(%arg0: i32) -> (i32, i32) {
    %c0_i32 = arith.constant 0 : i32
    %c0_i32_0 = arith.constant 0 : i32
    %c0_i32_1 = arith.constant 0 : i32
    return %c0_i32, %c0_i32_0 : i32, i32
  }
  func.func @transform_4(%arg0: i32) -> (i32, i32) {
    %c0_i32 = arith.constant 0 : i32
    %c0_i32_0 = arith.constant 0 : i32
    %c0_i32_1 = arith.constant 0 : i32
    return %c0_i32, %c0_i32_0 : i32, i32
  }
  func.func @transform_5(%arg0: i32) -> (i32, i32, i32) {
    %c0_i32 = arith.constant 0 : i32
    %c0_i32_0 = arith.constant 0 : i32
    %c0_i32_1 = arith.constant 0 : i32
    %c0_i32_2 = arith.constant 0 : i32
    return %c0_i32, %c0_i32_0, %c0_i32_1 : i32, i32, i32
  }
}

</mosaic_0001>

<llo_original>
// kernel: tpu_custom_call.1
$region0: #{tpu_custom_call.1}
  #allocation0 [shape = 'u32[]', space=smem, size = 0x4, offset = 0x4, fixed_abs, tag = 'smem constant byte address 0x4 - core index']
  #allocation1 [shape = 'u32[144,128]{1,0:T(1,128)}', space=vmem, size = 0x12000, scoped, tag = 'internal scratch']
  %s0 = inlined_call_operand.hbm [shape: f32[2,4,512], index: 0, kind: input, shape index: {}]
  %s1 = inlined_call_operand.vmem [shape: f32[4,1], index: 1, kind: input, shape index: {}]
  %s2 = inlined_call_operand.vmem [shape: f32[4,1], index: 2, kind: input, shape index: {}]
  %s3 = inlined_call_operand.vmem [shape: f32[8,4], index: 3, kind: input, shape index: {}]
  %s4 = inlined_call_operand.vmem [shape: f32[8,1], index: 4, kind: input, shape index: {}]
  %s5 = inlined_call_operand.hbm [shape: f32[2,8,512], index: 5, kind: output, shape index: {}]
  %s6 = sld [smem:[#allocation0]]
  $region34: #{tpu_custom_call.1} parent=0
    _
  %s8 = ssub.s32 1, %s6
  %s9 = scalar_select 0, %s8, %s6
  $region1: #{tpu_custom_call.1} parent=0
    #allocation2 [shape = 'u8[16384]{0}', space=vmem, size = 0x4000, scoped, tag = 'input window, operand 0, single buffered']
    #allocation3 [shape = 's32[1]{0}', space=sflag, size = 0x4, scoped, tag = 'scoped memory for tpu_custom_call.1']
    #allocation4 [shape = 's32[1]{0}', space=sflag, size = 0x4, scoped, tag = 'scoped memory for tpu_custom_call.1']
    #allocation5 [shape = 'u8[32768]{0}', space=vmem, size = 0x8000, scoped, tag = 'output window, operand 0, single buffered']
    %10 = vsyncpa [#allocation3], 0
    %11 = vsyncpa [#allocation4], 0
    // Predicated region
    $region2: #{tpu_custom_call.1} parent=1 // pred_check
      _
    $region3: #{tpu_custom_call.1} parent=1 // pred_check_branch
      %13 = sbr.rel (0) target = $region5
    $region4: #{tpu_custom_call.1} parent=1 // pred_region
      %s15 = ssub.s32 512, 512
      %16 = vsyncadd [#allocation3], %s15
      %s17 = sshll.u32 [#allocation2], 4
      %s18 = int_to_ptr.vmem [resolvable:$true] %s17
      %23 = dma.hbm_to_vmem [thread:$0]  %s0, 512, %s18, [#allocation3], 256, 256, 16
    $region5: #{tpu_custom_call.1} parent=1 // pred_fallthru
      _
    // Predicated region
    $region6: #{tpu_custom_call.1} parent=1 // pred_check
      _
    $region7: #{tpu_custom_call.1} parent=1 // pred_check_branch
      %25 = sbr.rel (0) target = $region9
    $region8: #{tpu_custom_call.1} parent=1 // pred_region
      _
    $region9: #{tpu_custom_call.1} parent=1 // pred_fallthru
      _
    // Predicated region
    $region10: #{tpu_custom_call.1} parent=1 // pred_check
      _
    $region11: #{tpu_custom_call.1} parent=1 // pred_check_branch
      %27 = sbr.rel (0) target = $region13
    $region12: #{tpu_custom_call.1} parent=1 // pred_region
      _
    $region13: #{tpu_custom_call.1} parent=1 // pred_fallthru
      _
    // Predicated region
    $region14: #{tpu_custom_call.1} parent=1 // pred_check
      _
    $region15: #{tpu_custom_call.1} parent=1 // pred_check_branch
      %29 = sbr.rel (0) target = $region17
    $region16: #{tpu_custom_call.1} parent=1 // pred_region
      _
    $region17: #{tpu_custom_call.1} parent=1 // pred_fallthru
      _
    // Predicated region
    $region18: #{tpu_custom_call.1} parent=1 // pred_check
      _
    $region19: #{tpu_custom_call.1} parent=1 // pred_check_branch
      %31 = sbr.rel (0) target = $region21
    $region20: #{tpu_custom_call.1} parent=1 // pred_region
      _
    $region21: #{tpu_custom_call.1} parent=1 // pred_fallthru
      _
    // Predicated region
    $region22: #{tpu_custom_call.1} parent=1 // pred_check
      _
    $region23: #{tpu_custom_call.1} parent=1 // pred_check_branch
      %33 = sbr.rel (0) target = $region25
    $region24: #{tpu_custom_call.1} parent=1 // pred_region
      %34 = dma.done [#allocation3], 512
    $region25: #{tpu_custom_call.1} parent=1 // pred_fallthru
      _
    %v35 = vld [vmem:[#allocation2] sm:$0xff]
    %v36 = vld [vmem:[#allocation2 + $0x8] sm:$0xff]
    %v39 = vcombine.high %v35, %v35
    %v40 = vcombine.high %v36, %v36
    %vm43 = vcmask 1043456
    %v44 = vsel %vm43, %v35, 0.0
    %v45 = vsel %vm43, %v39, 0.0
    %v46 = vadd.f32 %v44, %v45
    %v47 = vsel %vm43, %v36, 0.0
    %v48 = vadd.f32 %v46, %v47
    %v49 = vsel %vm43, %v40, 0.0
    %v50 = vadd.f32 %v48, %v49
    %51 = vadd.xlane.f32.xlu0 %v50
    %v52 = vpop.xlane.xlu0 %51
    %v53 = vadd.f32 %v52, 0.0
    %s54 = scalar_lea.vmem [#allocation2], 16
    %v55 = vld [vmem:[%s54] sm:$0xff]
    %v56 = vld [vmem:[%s54 + $0x8] sm:$0xff]
    %v59 = vcombine.high %v55, %v55
    %v60 = vcombine.high %v56, %v56
    %v63 = vsel %vm43, %v55, 0.0
    %v64 = vsel %vm43, %v59, 0.0
    %v65 = vadd.f32 %v63, %v64
    %v66 = vsel %vm43, %v56, 0.0
    %v67 = vadd.f32 %v65, %v66
    %v68 = vsel %vm43, %v60, 0.0
    %v69 = vadd.f32 %v67, %v68
    %70 = vadd.xlane.f32.xlu0 %v69
    %v71 = vpop.xlane.xlu0 %70
    %v72 = vadd.f32 %v53, %v71
    %v73 = vmul.f32 %v72, 0.0009765625
    %v76 = vunpack.c.l.s4 839922192
    %v77 = vunpack.c.0.s8 %v76
    %v78 = vlaneseq
    %v79 = vshrl.u32 %v78, 7
    %v80 = vsub.s32 %v77, %v79
    %v81 = vrot.slane %v73, %v80
    %v83 = vsub.f32 %v35, %v81
    %v84 = vsub.f32 %v36, %v81
    %v85 = vmul.f32 %v83, %v83
    %v86 = vmul.f32 %v84, %v84
    %v89 = vcombine.high %v85, %v85
    %v90 = vcombine.high %v86, %v86
    %v93 = vsel %vm43, %v85, 0.0
    %v94 = vsel %vm43, %v89, 0.0
    %v95 = vadd.f32 %v93, %v94
    %v96 = vsel %vm43, %v86, 0.0
    %v97 = vadd.f32 %v95, %v96
    %v98 = vsel %vm43, %v90, 0.0
    %v99 = vadd.f32 %v97, %v98
    %100 = vadd.xlane.f32.xlu0 %v99
    %v101 = vpop.xlane.xlu0 %100
    %v102 = vadd.f32 %v101, 0.0
    %v103 = vsub.f32 %v55, %v81
    %v104 = vsub.f32 %v56, %v81
    %v105 = vmul.f32 %v103, %v103
    %v106 = vmul.f32 %v104, %v104
    %v109 = vcombine.high %v105, %v105
    %v110 = vcombine.high %v106, %v106
    %v113 = vsel %vm43, %v105, 0.0
    %v114 = vsel %vm43, %v109, 0.0
    %v115 = vadd.f32 %v113, %v114
    %v116 = vsel %vm43, %v106, 0.0
    %v117 = vadd.f32 %v115, %v116
    %v118 = vsel %vm43, %v110, 0.0
    %v119 = vadd.f32 %v117, %v118
    %120 = vadd.xlane.f32.xlu0 %v119
    %v121 = vpop.xlane.xlu0 %120
    %v122 = vadd.f32 %v102, %v121
    %v123 = vmul.f32 %v122, 0.0009765625
    %v124 = vld [vmem:[%s1] sm:$0xf]
    %v125 = vadd.f32 %v123, 1e-05
    %v126 = vrsqrt.pop %v125
    %v127 = vmul.f32 %v124, %v126
    %v128 = vld [vmem:[%s2] sm:$0xf]
    %v129 = vmul.f32 %v73, %v127
    %v130 = vsub.f32 %v128, %v129
    %v131 = vld [vmem:[%s3] sm:$0xff]
    %133 = vset.pattern.permute.xlu0 0
    %134 = vperm.xlu0 %133, %v127
    %v135 = vpop.permute.xlu0 %134
    %v137 = vunpack.c.l.s4 839922192
    %v138 = vunpack.c.0.s8 %v137
    %v139 = vlaneseq
    %v140 = vshrl.u32 %v139, 7
    %v141 = vsub.s32 %v138, %v140
    %v142 = vrot.slane %v135, %v141
    %v144 = vmul.f32 %v35, %v142
    %v145 = vmul.f32 %v36, %v142
    %147 = vset.pattern.permute.xlu0 0
    %148 = vperm.xlu0 %147, %v130
    %v149 = vpop.permute.xlu0 %148
    %v151 = vunpack.c.l.s4 839922192
    %v152 = vunpack.c.0.s8 %v151
    %v153 = vlaneseq
    %v154 = vshrl.u32 %v153, 7
    %v155 = vsub.s32 %v152, %v154
    %v156 = vrot.slane %v149, %v155
    %v158 = vadd.f32 %v144, %v156
    %v159 = vadd.f32 %v145, %v156
    %vm160 = vcmp.ge.f32.partialorder %v158, 0.0
    %vm161 = vcmp.ge.f32.partialorder %v159, 0.0
    %v162 = vmul.f32 %v158, 0.01
    %v163 = vmul.f32 %v159, 0.01
    %v164 = vsel %vm160, %v158, %v162
    %v165 = vsel %vm161, %v159, %v163
    %v166 = vld [vmem:[%s4] sm:$0xff]
    %168 = vset.pattern.permute.xlu0 0
    %169 = vperm.xlu0 %168, %v166
    %v170 = vpop.permute.xlu0 %169
    %v174 = vcombine.high %v164, %v164
    %v175 = vcombine.high %v165, %v165
    %vm176 = vcmask 31744
    %v178 = vsel %vm176, %v131, 0
    %v180 = vsel %vm43, %v164, 0
    %v182 = vsel %vm43, %v174, 0
    %v184 = vsel %vm43, %v165, 0
    %v186 = vsel %vm43, %v175, 0
    %188 = vmatprep.subr.mxu0 %v182
    %189 = vmatpush1.msra.mxu0 %v180
    %190 = vmatprep.subr.mxu0 0.0
    %191 = vmatpush1.msra.mxu0 0.0
    %192 = vmatprep.subr.mxu0 0.0
    %193 = vmatpush1.msra.mxu0 0.0
    %194 = vmatprep.subr.mxu0 0.0
    %195 = vmatpush1.msra.mxu0 0.0
    %196 = vmatprep.subr.mxu0 0.0
    %197 = vmatpush1.msra.mxu0 0.0
    %198 = vmatprep.subr.mxu0 0.0
    %199 = vmatpush1.msra.mxu0 0.0
    %200 = vmatprep.subr.mxu0 0.0
    %201 = vmatpush1.msra.mxu0 0.0
    %202 = vmatprep.subr.mxu0 0.0
    %203 = vmatpush1.msra.mxu0 0.0
    %204 = vmatprep.subr.mxu0 0.0
    %205 = vmatpush1.msra.mxu0 0.0
    %206 = vmatprep.subr.mxu0 0.0
    %207 = vmatpush1.msra.mxu0 0.0
    %208 = vmatprep.subr.mxu0 0.0
    %209 = vmatpush1.msra.mxu0 0.0
    %210 = vmatprep.subr.mxu0 0.0
    %211 = vmatpush1.msra.mxu0 0.0
    %212 = vmatprep.subr.mxu0 0.0
    %213 = vmatpush1.msra.mxu0 0.0
    %214 = vmatprep.subr.mxu0 0.0
    %215 = vmatpush1.msra.mxu0 0.0
    %216 = vmatprep.subr.mxu0 0.0
    %217 = vmatpush1.msra.mxu0 0.0
    %218 = vmatprep.subr.mxu0 0.0
    %219 = vmatpush1.msra.mxu0 0.0
    %220 = vmatprep.subr.mxu0 0.0
    %221 = vmatpush1.msra.mxu0 0.0
    %222 = vmatprep.subr.mxu0 0.0
    %223 = vmatpush1.msra.mxu0 0.0
    %224 = vmatprep.subr.mxu0 0.0
    %225 = vmatpush1.msra.mxu0 0.0
    %226 = vmatprep.subr.mxu0 0.0
    %227 = vmatpush1.msra.mxu0 0.0
    %228 = vmatprep.subr.mxu0 0.0
    %229 = vmatpush1.msra.mxu0 0.0
    %230 = vmatprep.subr.mxu0 0.0
    %231 = vmatpush1.msra.mxu0 0.0
    %232 = vmatprep.subr.mxu0 0.0
    %233 = vmatpush1.msra.mxu0 0.0
    %234 = vmatprep.subr.mxu0 0.0
    %235 = vmatpush1.msra.mxu0 0.0
    %236 = vmatprep.subr.mxu0 0.0
    %237 = vmatpush1.msra.mxu0 0.0
    %238 = vmatprep.subr.mxu0 0.0
    %239 = vmatpush1.msra.mxu0 0.0
    %240 = vmatprep.subr.mxu0 0.0
    %241 = vmatpush1.msra.mxu0 0.0
    %242 = vmatprep.subr.mxu0 0.0
    %243 = vmatpush1.msra.mxu0 0.0
    %244 = vmatprep.subr.mxu0 0.0
    %245 = vmatpush1.msra.mxu0 0.0
    %246 = vmatprep.subr.mxu0 0.0
    %247 = vmatpush1.msra.mxu0 0.0
    %248 = vmatprep.subr.mxu0 0.0
    %249 = vmatpush1.msra.mxu0 0.0
    %250 = vmatprep.subr.mxu0 0.0
    %251 = vmatpush1.msra.mxu0 0.0
    %252 = vmatprep.mubr.f32.mxu0 0.0
    %253 = vmatmul.mubr.f32.gmra.mrb[0].mxu0 %v178
    %v254 = vpop.f32.mrb[0].mxu0
    %v255 = vadd.f32 %v170, %v254
    %v256 = vpop.f32.mrb[0].mxu0
    %v257 = vadd.f32 %v170, %v256
    %258 = vdwg.mxu0
    %259 = vmatprep.subr.mxu0 %v186
    %260 = vmatpush1.msra.mxu0 %v184
    %261 = vmatprep.subr.mxu0 0.0
    %262 = vmatpush1.msra.mxu0 0.0
    %263 = vmatprep.subr.mxu0 0.0
    %264 = vmatpush1.msra.mxu0 0.0
    %265 = vmatprep.subr.mxu0 0.0
    %266 = vmatpush1.msra.mxu0 0.0
    %267 = vmatprep.subr.mxu0 0.0
    %268 = vmatpush1.msra.mxu0 0.0
    %269 = vmatprep.subr.mxu0 0.0
    %270 = vmatpush1.msra.mxu0 0.0
    %271 = vmatprep.subr.mxu0 0.0
    %272 = vmatpush1.msra.mxu0 0.0
    %273 = vmatprep.subr.mxu0 0.0
    %274 = vmatpush1.msra.mxu0 0.0
    %275 = vmatprep.subr.mxu0 0.0
    %276 = vmatpush1.msra.mxu0 0.0
    %277 = vmatprep.subr.mxu0 0.0
    %278 = vmatpush1.msra.mxu0 0.0
    %279 = vmatprep.subr.mxu0 0.0
    %280 = vmatpush1.msra.mxu0 0.0
    %281 = vmatprep.subr.mxu0 0.0
    %282 = vmatpush1.msra.mxu0 0.0
    %283 = vmatprep.subr.mxu0 0.0
    %284 = vmatpush1.msra.mxu0 0.0
    %285 = vmatprep.subr.mxu0 0.0
    %286 = vmatpush1.msra.mxu0 0.0
    %287 = vmatprep.subr.mxu0 0.0
    %288 = vmatpush1.msra.mxu0 0.0
    %289 = vmatprep.subr.mxu0 0.0
    %290 = vmatpush1.msra.mxu0 0.0
    %291 = vmatprep.subr.mxu0 0.0
    %292 = vmatpush1.msra.mxu0 0.0
    %293 = vmatprep.subr.mxu0 0.0
    %294 = vmatpush1.msra.mxu0 0.0
    %295 = vmatprep.subr.mxu0 0.0
    %296 = vmatpush1.msra.mxu0 0.0
    %297 = vmatprep.subr.mxu0 0.0
    %298 = vmatpush1.msra.mxu0 0.0
    %299 = vmatprep.subr.mxu0 0.0
    %300 = vmatpush1.msra.mxu0 0.0
    %301 = vmatprep.subr.mxu0 0.0
    %302 = vmatpush1.msra.mxu0 0.0
    %303 = vmatprep.subr.mxu0 0.0
    %304 = vmatpush1.msra.mxu0 0.0
    %305 = vmatprep.subr.mxu0 0.0
    %306 = vmatpush1.msra.mxu0 0.0
    %307 = vmatprep.subr.mxu0 0.0
    %308 = vmatpush1.msra.mxu0 0.0
    %309 = vmatprep.subr.mxu0 0.0
    %310 = vmatpush1.msra.mxu0 0.0
    %311 = vmatprep.subr.mxu0 0.0
    %312 = vmatpush1.msra.mxu0 0.0
    %313 = vmatprep.subr.mxu0 0.0
    %314 = vmatpush1.msra.mxu0 0.0
    %315 = vmatprep.subr.mxu0 0.0
    %316 = vmatpush1.msra.mxu0 0.0
    %317 = vmatprep.subr.mxu0 0.0
    %318 = vmatpush1.msra.mxu0 0.0
    %319 = vmatprep.subr.mxu0 0.0
    %320 = vmatpush1.msra.mxu0 0.0
    %321 = vmatprep.subr.mxu0 0.0
    %322 = vmatpush1.msra.mxu0 0.0
    %323 = vmatprep.mubr.f32.mxu0 0.0
    %324 = vmatmul.mubr.f32.gmra.mrb[0].mxu0 %v178
    %v325 = vpop.f32.mrb[0].mxu0
    %v326 = vadd.f32 %v170, %v325
    %v327 = vpop.f32.mrb[0].mxu0
    %v328 = vadd.f32 %v170, %v327
    %329 = vdwg.mxu0
    %330 = vst [vmem:[#allocation5] sm:$0xff] %v255
    %331 = vst [vmem:[#allocation5 + $0x8] sm:$0xff] %v257
    %332 = vst [vmem:[#allocation5 + $0x10] sm:$0xff] %v326
    %333 = vst [vmem:[#allocation5 + $0x18] sm:$0xff] %v328
    %v334 = vld [vmem:[%s54] sm:$0xff]
    %v335 = vld [vmem:[%s54 + $0x8] sm:$0xff]
    %v336 = vmul.f32 %v334, %v142
    %v337 = vmul.f32 %v335, %v142
    %v338 = vadd.f32 %v336, %v156
    %v339 = vadd.f32 %v337, %v156
    %vm340 = vcmp.ge.f32.partialorder %v338, 0.0
    %vm341 = vcmp.ge.f32.partialorder %v339, 0.0
    %v342 = vmul.f32 %v338, 0.01
    %v343 = vmul.f32 %v339, 0.01
    %v344 = vsel %vm340, %v338, %v342
    %v345 = vsel %vm341, %v339, %v343
    %v346 = vld [vmem:[%s4] sm:$0xff]
    %348 = vset.pattern.permute.xlu0 0
    %349 = vperm.xlu0 %348, %v346
    %v350 = vpop.permute.xlu0 %349
    %v354 = vcombine.high %v344, %v344
    %v355 = vcombine.high %v345, %v345
    %v356 = vsel %vm43, %v344, 0
    %v358 = vsel %vm43, %v354, 0
    %v360 = vsel %vm43, %v345, 0
    %v362 = vsel %vm43, %v355, 0
    %364 = vmatprep.subr.mxu0 %v358
    %365 = vmatpush1.msra.mxu0 %v356
    %366 = vmatprep.subr.mxu0 0.0
    %367 = vmatpush1.msra.mxu0 0.0
    %368 = vmatprep.subr.mxu0 0.0
    %369 = vmatpush1.msra.mxu0 0.0
    %370 = vmatprep.subr.mxu0 0.0
    %371 = vmatpush1.msra.mxu0 0.0
    %372 = vmatprep.subr.mxu0 0.0
    %373 = vmatpush1.msra.mxu0 0.0
    %374 = vmatprep.subr.mxu0 0.0
    %375 = vmatpush1.msra.mxu0 0.0
    %376 = vmatprep.subr.mxu0 0.0
    %377 = vmatpush1.msra.mxu0 0.0
    %378 = vmatprep.subr.mxu0 0.0
    %379 = vmatpush1.msra.mxu0 0.0
    %380 = vmatprep.subr.mxu0 0.0
    %381 = vmatpush1.msra.mxu0 0.0
    %382 = vmatprep.subr.mxu0 0.0
    %383 = vmatpush1.msra.mxu0 0.0
    %384 = vmatprep.subr.mxu0 0.0
    %385 = vmatpush1.msra.mxu0 0.0
    %386 = vmatprep.subr.mxu0 0.0
    %387 = vmatpush1.msra.mxu0 0.0
    %388 = vmatprep.subr.mxu0 0.0
    %389 = vmatpush1.msra.mxu0 0.0
    %390 = vmatprep.subr.mxu0 0.0
    %391 = vmatpush1.msra.mxu0 0.0
    %392 = vmatprep.subr.mxu0 0.0
    %393 = vmatpush1.msra.mxu0 0.0
    %394 = vmatprep.subr.mxu0 0.0
    %395 = vmatpush1.msra.mxu0 0.0
    %396 = vmatprep.subr.mxu0 0.0
    %397 = vmatpush1.msra.mxu0 0.0
    %398 = vmatprep.subr.mxu0 0.0
    %399 = vmatpush1.msra.mxu0 0.0
    %400 = vmatprep.subr.mxu0 0.0
    %401 = vmatpush1.msra.mxu0 0.0
    %402 = vmatprep.subr.mxu0 0.0
    %403 = vmatpush1.msra.mxu0 0.0
    %404 = vmatprep.subr.mxu0 0.0
    %405 = vmatpush1.msra.mxu0 0.0
    %406 = vmatprep.subr.mxu0 0.0
    %407 = vmatpush1.msra.mxu0 0.0
    %408 = vmatprep.subr.mxu0 0.0
    %409 = vmatpush1.msra.mxu0 0.0
    %410 = vmatprep.subr.mxu0 0.0
    %411 = vmatpush1.msra.mxu0 0.0
    %412 = vmatprep.subr.mxu0 0.0
    %413 = vmatpush1.msra.mxu0 0.0
    %414 = vmatprep.subr.mxu0 0.0
    %415 = vmatpush1.msra.mxu0 0.0
    %416 = vmatprep.subr.mxu0 0.0
    %417 = vmatpush1.msra.mxu0 0.0
    %418 = vmatprep.subr.mxu0 0.0
    %419 = vmatpush1.msra.mxu0 0.0
    %420 = vmatprep.subr.mxu0 0.0
    %421 = vmatpush1.msra.mxu0 0.0
    %422 = vmatprep.subr.mxu0 0.0
    %423 = vmatpush1.msra.mxu0 0.0
    %424 = vmatprep.subr.mxu0 0.0
    %425 = vmatpush1.msra.mxu0 0.0
    %426 = vmatprep.subr.mxu0 0.0
    %427 = vmatpush1.msra.mxu0 0.0
    %428 = vmatprep.mubr.f32.mxu0 0.0
    %429 = vmatmul.mubr.f32.gmra.mrb[0].mxu0 %v178
    %v430 = vpop.f32.mrb[0].mxu0
    %v431 = vadd.f32 %v350, %v430
    %v432 = vpop.f32.mrb[0].mxu0
    %v433 = vadd.f32 %v350, %v432
    %434 = vdwg.mxu0
    %435 = vmatprep.subr.mxu0 %v362
    %436 = vmatpush1.msra.mxu0 %v360
    %437 = vmatprep.subr.mxu0 0.0
    %438 = vmatpush1.msra.mxu0 0.0
    %439 = vmatprep.subr.mxu0 0.0
    %440 = vmatpush1.msra.mxu0 0.0
    %441 = vmatprep.subr.mxu0 0.0
    %442 = vmatpush1.msra.mxu0 0.0
    %443 = vmatprep.subr.mxu0 0.0
    %444 = vmatpush1.msra.mxu0 0.0
    %445 = vmatprep.subr.mxu0 0.0
    %446 = vmatpush1.msra.mxu0 0.0
    %447 = vmatprep.subr.mxu0 0.0
    %448 = vmatpush1.msra.mxu0 0.0
    %449 = vmatprep.subr.mxu0 0.0
    %450 = vmatpush1.msra.mxu0 0.0
    %451 = vmatprep.subr.mxu0 0.0
    %452 = vmatpush1.msra.mxu0 0.0
    %453 = vmatprep.subr.mxu0 0.0
    %454 = vmatpush1.msra.mxu0 0.0
    %455 = vmatprep.subr.mxu0 0.0
    %456 = vmatpush1.msra.mxu0 0.0
    %457 = vmatprep.subr.mxu0 0.0
    %458 = vmatpush1.msra.mxu0 0.0
    %459 = vmatprep.subr.mxu0 0.0
    %460 = vmatpush1.msra.mxu0 0.0
    %461 = vmatprep.subr.mxu0 0.0
    %462 = vmatpush1.msra.mxu0 0.0
    %463 = vmatprep.subr.mxu0 0.0
    %464 = vmatpush1.msra.mxu0 0.0
    %465 = vmatprep.subr.mxu0 0.0
    %466 = vmatpush1.msra.mxu0 0.0
    %467 = vmatprep.subr.mxu0 0.0
    %468 = vmatpush1.msra.mxu0 0.0
    %469 = vmatprep.subr.mxu0 0.0
    %470 = vmatpush1.msra.mxu0 0.0
    %471 = vmatprep.subr.mxu0 0.0
    %472 = vmatpush1.msra.mxu0 0.0
    %473 = vmatprep.subr.mxu0 0.0
    %474 = vmatpush1.msra.mxu0 0.0
    %475 = vmatprep.subr.mxu0 0.0
    %476 = vmatpush1.msra.mxu0 0.0
    %477 = vmatprep.subr.mxu0 0.0
    %478 = vmatpush1.msra.mxu0 0.0
    %479 = vmatprep.subr.mxu0 0.0
    %480 = vmatpush1.msra.mxu0 0.0
    %481 = vmatprep.subr.mxu0 0.0
    %482 = vmatpush1.msra.mxu0 0.0
    %483 = vmatprep.subr.mxu0 0.0
    %484 = vmatpush1.msra.mxu0 0.0
    %485 = vmatprep.subr.mxu0 0.0
    %486 = vmatpush1.msra.mxu0 0.0
    %487 = vmatprep.subr.mxu0 0.0
    %488 = vmatpush1.msra.mxu0 0.0
    %489 = vmatprep.subr.mxu0 0.0
    %490 = vmatpush1.msra.mxu0 0.0
    %491 = vmatprep.subr.mxu0 0.0
    %492 = vmatpush1.msra.mxu0 0.0
    %493 = vmatprep.subr.mxu0 0.0
    %494 = vmatpush1.msra.mxu0 0.0
    %495 = vmatprep.subr.mxu0 0.0
    %496 = vmatpush1.msra.mxu0 0.0
    %497 = vmatprep.subr.mxu0 0.0
    %498 = vmatpush1.msra.mxu0 0.0
    %499 = vmatprep.mubr.f32.mxu0 0.0
    %500 = vmatmul.mubr.f32.gmra.mrb[0].mxu0 %v178
    %v501 = vpop.f32.mrb[0].mxu0
    %v502 = vadd.f32 %v350, %v501
    %v503 = vpop.f32.mrb[0].mxu0
    %v504 = vadd.f32 %v350, %v503
    %505 = vdwg.mxu0
    %s506 = scalar_lea.vmem [#allocation5], 32
    %507 = vst [vmem:[%s506] sm:$0xff] %v431
    %508 = vst [vmem:[%s506 + $0x8] sm:$0xff] %v433
    %509 = vst [vmem:[%s506 + $0x10] sm:$0xff] %v502
    %510 = vst [vmem:[%s506 + $0x18] sm:$0xff] %v504
    // Predicated region
    $region26: #{tpu_custom_call.1} parent=1 // pred_check
      _
    $region27: #{tpu_custom_call.1} parent=1 // pred_check_branch
      %512 = sbr.rel (0) target = $region29
    $region28: #{tpu_custom_call.1} parent=1 // pred_region
      %s514 = ssub.s32 1024, 1024
      %515 = vsyncadd [#allocation4], %s514
      %s516 = sshll.u32 [#allocation5], 4
      %s517 = int_to_ptr.vmem [resolvable:$true] %s516
      %522 = dma.vmem_to_hbm [thread:$0]  %s517, 1024, %s5, [#allocation4], 512, 512, 32
    $region29: #{tpu_custom_call.1} parent=1 // pred_fallthru
      _
    // Predicated region
    $region30: #{tpu_custom_call.1} parent=1 // pred_check
      _
    $region31: #{tpu_custom_call.1} parent=1 // pred_check_branch
      %524 = sbr.rel (0) target = $region33
    $region32: #{tpu_custom_call.1} parent=1 // pred_region
      %525 = dma.done [#allocation4], 1024
    $region33: #{tpu_custom_call.1} parent=1 // pred_fallthru
      _
    %526 = vsyncpa [#allocation3], 1
    %527 = vsyncpa [#allocation4], 1

</llo_original>
